<compile_context>
chip_gen: v5e
topology: v5e:2x2
jax: 0.10.0
libtpu: 0.0.40
codegen_flags: <defaults>
</compile_context>

<pallas_src>
import jax
import jax.numpy as jnp
from jax.experimental import pallas as pl
from jax.experimental.pallas import tpu as pltpu


def _identity_kernel(x_ref, o_ref):
    # Pure streaming copy: one VMEM tile in, same tile out.
    o_ref[...] = x_ref[...]


_TUNING_CACHE = None


def _tuning():
    """(target_tile_bytes, vmem_limit_bytes) — generation-aware, memoized."""
    global _TUNING_CACHE
    if _TUNING_CACHE is None:
        target, limit = 4 << 20, 32 << 20                # safe fallback
        try:
            cap = getattr(pltpu.get_tpu_info(), "vmem_capacity_bytes", None)
            if cap is not None:
                if cap >= (96 << 20):                    # v5e / v6e: 128 MiB VMEM
                    target, limit = 8 << 20, 64 << 20
                else:                                    # v7x-class: 64 MiB per TC
                    target, limit = 10 << 20, 48 << 20
        except Exception:
            pass
        _TUNING_CACHE = (target, limit)
    return _TUNING_CACHE


def _sublane(itemsize):
    # Sublane packing granularity: 8 rows f32, 16 bf16, 32 int8.
    return 8 * max(1, 4 // itemsize)


def _pick_cols(total):
    """Widest lane-dense column count (multiple of 128) that still leaves rows."""
    cols = 128
    while cols < 4096 and total % (cols * 2) == 0 and total // (cols * 2) >= 16:
        cols *= 2
    return cols


def _pick_row_tile(rows, cols, itemsize, target_tile_bytes, vmem_limit_bytes):
    sub = _sublane(itemsize)
    if rows <= sub:
        return rows                                      # full extent (legal block)
    row_bytes = cols * itemsize
    rows_up = -(-rows // sub) * sub
    # 2 input + 2 output double buffers ~= 4x tile; keep ~20% headroom.
    max_tb = max(sub, ((vmem_limit_bytes // 5) // row_bytes) // sub * sub)
    tb = max(sub, (target_tile_bytes // row_bytes) // sub * sub)
    tb = min(tb, max_tb, rows_up)

    # Prefer an even grid (>1 step) so v7x's 2 TensorCores stay balanced.
    g = -(-rows // tb)
    if g > 1 and g % 2 == 1:
        for g_try in (g + 1, g - 1):
            if g_try < 2:
                continue
            tb_try = -(-(-(-rows // g_try)) // sub) * sub
            tb_try = max(sub, min(tb_try, rows_up))
            if tb_try > max_tb:
                continue
            g_new = -(-rows // tb_try)
            if g_new == 1 or g_new % 2 == 0:
                tb = tb_try
                break
    return tb


def _copy_2d(x2, tb, vmem_limit_bytes):
    rows, cols = x2.shape
    return pl.pallas_call(
        _identity_kernel,
        out_shape=jax.ShapeDtypeStruct((rows, cols), x2.dtype),
        grid_spec=pltpu.PrefetchScalarGridSpec(
            num_scalar_prefetch=0,
            grid=(pl.cdiv(rows, tb),),
            in_specs=[pl.BlockSpec((tb, cols), lambda i: (i, 0))],
            out_specs=pl.BlockSpec((tb, cols), lambda i: (i, 0)),
        ),
        # Output reuses the input HBM buffer — no second N-byte allocation.
        input_output_aliases={0: 0},
        compiler_params=pltpu.CompilerParams(
            dimension_semantics=("parallel",),
            vmem_limit_bytes=vmem_limit_bytes,
        ),
    )(x2)


@jax.jit
def identity_forward(x):
    """Pallas implementation of TorchIdentityLayer.forward: bit-exact pass-through."""
    if x.ndim == 0 or x.size == 0:
        return x                                          # nothing to tile

    itemsize = jnp.dtype(x.dtype).itemsize
    target_tile, vmem_limit = _tuning()
    total = x.size
    sub = _sublane(itemsize)

    if total % 128 == 0:
        # Lane-dense flatten: unmasked full-width stores.
        cols = _pick_cols(total)
        rows = total // cols
        tb = _pick_row_tile(rows, cols, itemsize, target_tile, vmem_limit)
        y2 = _copy_2d(x.reshape(rows, cols), tb, vmem_limit)
        return y2.reshape(x.shape)

    # Element count not a multiple of 128: pad to a lane-dense layout in the
    # wrapper instead of running a masked, lane-sparse kernel with a narrow
    # trailing dim (e.g. 7/128 lane utilization).
    flat = x.reshape(total)
    chunk = 128 * sub
    padded = -(-total // chunk) * chunk
    flat_p = jnp.pad(flat, (0, padded - total))
    cols = _pick_cols(padded)
    rows = padded // cols
    tb = _pick_row_tile(rows, cols, itemsize, target_tile, vmem_limit)
    y2 = _copy_2d(flat_p.reshape(rows, cols), tb, vmem_limit)
    return y2.reshape(padded)[:total].reshape(x.shape)


if __name__ == "__main__":
    key = jax.random.PRNGKey(0)

    # Small input consistent with the module: (batch=2, channels=4, 16x16).
    x = jax.random.normal(key, (2, 4, 16, 16), dtype=jnp.float32)
    y = identity_forward(x)
    jax.block_until_ready(y)
    assert y.shape == x.shape and y.dtype == x.dtype
    assert bool(jnp.all(y == x))

    # Odd, non-lane-aligned shape exercises the padded lane-dense path.
    x_odd = jax.random.normal(jax.random.PRNGKey(1), (3, 5, 7), dtype=jnp.float32)
    y_odd = identity_forward(x_odd)
    jax.block_until_ready(y_odd)
    assert y_odd.shape == x_odd.shape
    assert bool(jnp.all(y_odd == x_odd))

    # bf16 path (packed sublanes -> 16-row tile granularity).
    x_bf = jax.random.normal(jax.random.PRNGKey(2), (8, 32), dtype=jnp.bfloat16)
    y_bf = identity_forward(x_bf)
    jax.block_until_ready(y_bf)
    assert y_bf.dtype == jnp.bfloat16
    assert bool(jnp.all(y_bf == x_bf))

    print("KERNEL_OK")
</pallas_src>

<mosaic_0001>
module attributes {stable_mosaic.version = 11 : i64} {
  func.func @_identity_kernel(%arg0: i32, %arg1: memref<16x128xf32, #tpu.memory_space<vmem>>, %arg2: memref<16x128xf32, #tpu.memory_space<vmem>>) attributes {dimension_semantics = [#tpu.dimension_semantics<parallel>], iteration_bounds = array<i64: 1>, scalar_prefetch = 0 : i64, scratch_operands = 0 : i64, tpu.core_type = #tpu.core_type<tc>, window_params = [{transform_indices = @transform_0, window_bounds = array<i64: 16, 128>}, {transform_indices = @transform_1, window_bounds = array<i64: 16, 128>}]} {
    %c0 = arith.constant 0 : index
    %c0_0 = arith.constant 0 : index
    %0 = vector.load %arg1[%c0, %c0_0] : memref<16x128xf32, #tpu.memory_space<vmem>>, vector<16x128xf32>
    %c0_1 = arith.constant 0 : index
    %c0_2 = arith.constant 0 : index
    %1 = vector.load %arg2[%c0_1, %c0_2] : memref<16x128xf32, #tpu.memory_space<vmem>>, vector<16x128xf32>
    tpu.vector_store %arg2[%c0_1, %c0_2], %0 {strides = array<i32>} : memref<16x128xf32, #tpu.memory_space<vmem>>, vector<16x128xf32>,
    return
  }
  func.func @transform_0(%arg0: i32) -> (i32, i32) {
    %c0_i32 = arith.constant 0 : i32
    %c0_i32_0 = arith.constant 0 : i32
    return %arg0, %c0_i32 : i32, i32
  }
  func.func @transform_1(%arg0: i32) -> (i32, i32) {
    %c0_i32 = arith.constant 0 : i32
    %c0_i32_0 = arith.constant 0 : i32
    return %arg0, %c0_i32 : i32, i32
  }
}

</mosaic_0001>

<llo_original>
// kernel: identity_forward.1
$region0: #{identity_forward.1}
  #allocation0 [shape = 'u32[]', space=smem, size = 0x4, offset = 0x4, fixed_abs, tag = 'smem constant byte address 0x4 - core index']
  #allocation1 [shape = 'u32[72,128]{1,0:T(1,128)}', space=vmem, size = 0x9000, scoped, tag = 'internal scratch']
  %s0 = inlined_call_operand.vmem [shape: f32[16,128], index: 0, kind: input, shape index: {}, may-alias: {0,1}]
  %s1 = inlined_call_operand.vmem [shape: f32[16,128], index: 1, kind: output, shape index: {}, may-alias: {0,1}]
  %s2 = sld [smem:[#allocation0]]
  $region14: #{identity_forward.1} parent=0
    _
  %s4 = ssub.s32 1, %s2
  %s5 = scalar_select 0, %s4, %s2
  // Predicated region
  $region2: #{identity_forward.1} parent=0 // pred_check
    _
  $region3: #{identity_forward.1} parent=0 // pred_check_branch
    %7 = sbr.rel (0) target = $region5
  $region4: #{identity_forward.1} parent=0 // pred_region
    _
  $region5: #{identity_forward.1} parent=0 // pred_fallthru
    _
  %v8 = vld [vmem:[%s0] sm:$0xff]
  %v9 = vld [vmem:[%s0 + $0x8] sm:$0xff]
  %10 = vst [vmem:[%s1] sm:$0xff] %v8
  %11 = vst [vmem:[%s1 + $0x8] sm:$0xff] %v9
  // Predicated region
  $region6: #{identity_forward.1} parent=0 // pred_check
    _
  $region7: #{identity_forward.1} parent=0 // pred_check_branch
    %13 = sbr.rel (0) target = $region9
  $region8: #{identity_forward.1} parent=0 // pred_region
    _
  $region9: #{identity_forward.1} parent=0 // pred_fallthru
    _
  // Predicated region
  $region10: #{identity_forward.1} parent=0 // pred_check
    _
  $region11: #{identity_forward.1} parent=0 // pred_check_branch
    %15 = sbr.rel (0) target = $region13
  $region12: #{identity_forward.1} parent=0 // pred_region
    _
  $region13: #{identity_forward.1} parent=0 // pred_fallthru
    _

</llo_original>
